<compile_context>
chip_gen: v5e
topology: v5e:2x2
jax: 0.10.0
libtpu: 0.0.40
codegen_flags: <defaults>
</compile_context>

<pallas_src>
import jax
import jax.numpy as jnp
from jax.experimental import pallas as pl
from jax.experimental.pallas import tpu as pltpu


def history_attention_kernel(hist_ref, w_ref, out_ref):
    """hist_ref: (TB, H, D) history tile; w_ref: (1, D) history_net weight;
    out_ref: (TB, D) attended history."""
    hist = hist_ref[...]                                      # (TB, H, D)
    w = w_ref[...]                                            # (1, D)

    # history_net logit per step; b_hist / cur_emb / b_hid cancel under the softmax
    # over the history axis, so they are not computed here (dead compute removed).
    logits = jnp.sum(hist * w[None, :, :], axis=-1)           # (TB, H)  lane reduce

    # Softmax over the history axis (H is the true length -> no padding mask needed).
    m = jnp.max(logits, axis=-1, keepdims=True)
    p = jnp.exp(logits - m)
    denom = jnp.sum(p, axis=-1, keepdims=True)
    inv = pl.reciprocal(denom, approx=True)                   # EUP slot (free)
    inv = inv * (2.0 - denom * inv)                           # one Newton step -> f32 accurate
    att = p * inv                                             # (TB, H)

    # Weighted sum over history steps -> lane-dense (TB, D) store.
    out_ref[...] = jnp.sum(hist * att[:, :, None], axis=1)


def history_attention_forward(current, history, w_hist, b_hist, w_hid, b_hid,
                              *, block_b=1024):
    """current: (B, D); history: (B, H, D) already clipped to max_history_size
    (H includes the just-appended `previous`, so H >= 1); w_hist/w_hid: (1, D);
    biases: (1,).

    `current`, b_hist, w_hid and b_hid do not influence the output (constant along
    the softmax axis) -- accepted only for interface parity with the nn.Module.

    block_b: batch rows per tile.  Per-chip guidance (f32, D=128, H<=15):
      v5e <= 512 (16 MiB scoped VMEM default), v6e 1024-2048, v7x ~2048 with
      grid_b >= 2 so both TensorCores stream.  For small B a single block is used.
    """
    del current, b_hist, w_hid, b_hid

    B, H, D = history.shape
    assert H >= 1, "history must contain at least the just-appended `previous`"

    # Batch tiling with NO HBM-side padding.
    if B <= block_b:
        tb = B                                   # single tile; full-dim block is legal
    else:
        tb = max(8, (block_b // 8) * 8)          # sublane-aligned output block
    grid_b = pl.cdiv(B, tb)                      # last block may be partial; rows are
                                                 # independent, tail stores are masked

    out = pl.pallas_call(
        history_attention_kernel,
        out_shape=jax.ShapeDtypeStruct((B, D), jnp.float32),
        grid=(grid_b,),
        in_specs=[
            # (tb, H, D): last two block dims equal the full array dims -> no (8,128)
            # divisibility requirement, no padding, no mask.
            pl.BlockSpec((tb, H, D), lambda i: (i, 0, 0)),     # history tile
            pl.BlockSpec((1, D), lambda i: (0, 0)),            # resident weight
        ],
        out_specs=pl.BlockSpec((tb, D), lambda i: (i, 0)),
        compiler_params=pltpu.CompilerParams(
            dimension_semantics=("parallel",),   # shard batch tiles across TensorCores
        ),
    )(history, w_hist)
    return out


def reference_forward(current, history, w_hist, b_hist, w_hid, b_hid):
    """Pure-JAX reference of the FULL PyTorch formula (cur_emb and both biases kept)."""
    hist_emb = jnp.einsum("bhd,d->bh", history, w_hist[0]) + b_hist[0]   # (B, H)
    cur_emb = current @ w_hid.T + b_hid[0]                               # (B, 1)
    att = jax.nn.softmax(hist_emb + cur_emb, axis=-1)
    return jnp.einsum("bh,bhd->bd", att, history)


if __name__ == "__main__":
    B, D = 16, 128               # batch, hidden_size (D multiple of 128 -> lane-dense)
    max_history_size = 15
    n_past = 6                   # history entries stored before this call

    key = jax.random.PRNGKey(0)
    k_wh, k_bh, k_wc, k_bc, k_cur, k_prev, k_hist = jax.random.split(key, 7)

    # nn.Linear(hidden_size, 1) parameters.
    w_hist = jax.random.normal(k_wh, (1, D), jnp.float32) * 0.1
    b_hist = jax.random.normal(k_bh, (1,), jnp.float32) * 0.1
    w_hid = jax.random.normal(k_wc, (1, D), jnp.float32) * 0.1
    b_hid = jax.random.normal(k_bc, (1,), jnp.float32) * 0.1

    current = jax.random.normal(k_cur, (B, D), jnp.float32)
    previous = jax.random.normal(k_prev, (B, D), jnp.float32)
    past_history = jax.random.normal(k_hist, (B, n_past, D), jnp.float32)

    # Stateful module bookkeeping (Python lists): append `previous`, clip the window.
    # (Demo only; see TODO about a caller-side ring buffer for per-step decoding.)
    history = jnp.concatenate([past_history, previous[:, None, :]], axis=1)
    history = history[:, -max_history_size:, :]          # (B, H, D), H = 7

    out = history_attention_forward(
        current, history, w_hist, b_hist, w_hid, b_hid,
        block_b=1024,            # B=16 <= block_b -> single (B, H, D) tile, grid of 1
    )
    out = jax.block_until_ready(out)

    ref = reference_forward(current, history, w_hist, b_hist, w_hid, b_hid)
    assert out.shape == (B, D)
    assert jnp.allclose(out, ref, atol=1e-4, rtol=1e-4), "mismatch vs JAX reference"

    print("KERNEL_OK")
</pallas_src>

<mosaic_0001>
module attributes {stable_mosaic.version = 11 : i64} {
  func.func @history_attention_kernel(%arg0: i32, %arg1: memref<16x7x128xf32, #tpu.memory_space<vmem>>, %arg2: memref<1x128xf32, #tpu.memory_space<vmem>>, %arg3: memref<16x128xf32, #tpu.memory_space<vmem>>) attributes {dimension_semantics = [#tpu.dimension_semantics<parallel>], iteration_bounds = array<i64: 1>, scalar_prefetch = 0 : i64, scratch_operands = 0 : i64, tpu.core_type = #tpu.core_type<tc>, window_params = [{transform_indices = @transform_0, window_bounds = array<i64: 16, 7, 128>}, {pipeline_mode = #tpu.pipeline_mode<synchronous>, transform_indices = @transform_1, window_bounds = array<i64: 1, 128>}, {transform_indices = @transform_2, window_bounds = array<i64: 16, 128>}]} {
    %c0 = arith.constant 0 : index
    %c0_0 = arith.constant 0 : index
    %c0_1 = arith.constant 0 : index
    %0 = vector.load %arg1[%c0, %c0_0, %c0_1] : memref<16x7x128xf32, #tpu.memory_space<vmem>>, vector<16x7x128xf32>
    %c0_2 = arith.constant 0 : index
    %c0_3 = arith.constant 0 : index
    %1 = vector.load %arg2[%c0_2, %c0_3] : memref<1x128xf32, #tpu.memory_space<vmem>>, vector<1x128xf32>
    %2 = vector.shape_cast %1 : vector<1x128xf32> to vector<1x1x128xf32>
    %3 = vector.broadcast %2 : vector<1x1x128xf32> to vector<16x7x128xf32>
    %4 = arith.mulf %0, %3 : vector<16x7x128xf32>
    %cst = arith.constant dense<0.000000e+00> : vector<16x7xf32>
    %5 = vector.multi_reduction <add>, %4, %cst [2] : vector<16x7x128xf32> to vector<16x7xf32>
    %cst_4 = arith.constant dense<0xFF800000> : vector<16xf32>
    %6 = vector.multi_reduction <maximumf>, %5, %cst_4 [1] : vector<16x7xf32> to vector<16xf32>
    %7 = vector.shape_cast %6 : vector<16xf32> to vector<16x1xf32>
    %8 = vector.broadcast %7 : vector<16x1xf32> to vector<16x7xf32>
    %9 = arith.subf %5, %8 : vector<16x7xf32>
    %10 = math.exp %9 : vector<16x7xf32>
    %cst_5 = arith.constant dense<0.000000e+00> : vector<16xf32>
    %11 = vector.multi_reduction <add>, %10, %cst_5 [1] : vector<16x7xf32> to vector<16xf32>
    %12 = vector.shape_cast %11 : vector<16xf32> to vector<16x1xf32>
    %13 = tpu.reciprocal %12 {approx = true} : vector<16x1xf32> -> vector<16x1xf32>
    %14 = arith.mulf %12, %13 : vector<16x1xf32>
    %cst_6 = arith.constant 2.000000e+00 : f32
    %15 = vector.broadcast %cst_6 : f32 to vector<16x1xf32>
    %16 = arith.subf %15, %14 : vector<16x1xf32>
    %17 = arith.mulf %13, %16 : vector<16x1xf32>
    %18 = vector.broadcast %17 : vector<16x1xf32> to vector<16x7xf32>
    %19 = arith.mulf %10, %18 : vector<16x7xf32>
    %20 = vector.shape_cast %19 : vector<16x7xf32> to vector<16x7x1xf32>
    %21 = vector.broadcast %20 : vector<16x7x1xf32> to vector<16x7x128xf32>
    %22 = arith.mulf %0, %21 : vector<16x7x128xf32>
    %cst_7 = arith.constant dense<0.000000e+00> : vector<16x128xf32>
    %23 = vector.multi_reduction <add>, %22, %cst_7 [1] : vector<16x7x128xf32> to vector<16x128xf32>
    %c0_8 = arith.constant 0 : index
    %c0_9 = arith.constant 0 : index
    %24 = vector.load %arg3[%c0_8, %c0_9] : memref<16x128xf32, #tpu.memory_space<vmem>>, vector<16x128xf32>
    tpu.vector_store %arg3[%c0_8, %c0_9], %23 {strides = array<i32>} : memref<16x128xf32, #tpu.memory_space<vmem>>, vector<16x128xf32>,
    return
  }
  func.func @transform_0(%arg0: i32) -> (i32, i32, i32) {
    %c0_i32 = arith.constant 0 : i32
    %c0_i32_0 = arith.constant 0 : i32
    %c0_i32_1 = arith.constant 0 : i32
    return %arg0, %c0_i32, %c0_i32_0 : i32, i32, i32
  }
  func.func @transform_1(%arg0: i32) -> (i32, i32) {
    %c0_i32 = arith.constant 0 : i32
    %c0_i32_0 = arith.constant 0 : i32
    %c0_i32_1 = arith.constant 0 : i32
    return %c0_i32, %c0_i32_0 : i32, i32
  }
  func.func @transform_2(%arg0: i32) -> (i32, i32) {
    %c0_i32 = arith.constant 0 : i32
    %c0_i32_0 = arith.constant 0 : i32
    return %arg0, %c0_i32 : i32, i32
  }
}

</mosaic_0001>

<llo_original>
// kernel: tpu_custom_call.1
$region0: #{tpu_custom_call.1}
  #allocation0 [shape = 'u32[]', space=smem, size = 0x4, offset = 0x4, fixed_abs, tag = 'smem constant byte address 0x4 - core index']
  #allocation1 [shape = 'u32[72,128]{1,0:T(1,128)}', space=vmem, size = 0x9000, scoped, tag = 'internal scratch']
  %s0 = inlined_call_operand.vmem [shape: f32[16,7,128], index: 0, kind: input, shape index: {}]
  %s1 = inlined_call_operand.vmem [shape: f32[1,128], index: 1, kind: input, shape index: {}]
  %s2 = inlined_call_operand.hbm [shape: f32[16,128], index: 2, kind: output, shape index: {}]
  %s3 = sld [smem:[#allocation0]]
  $region18: #{tpu_custom_call.1} parent=0
    _
  %s5 = ssub.s32 1, %s3
  %s6 = scalar_select 0, %s5, %s3
  $region1: #{tpu_custom_call.1} parent=0
    #allocation2 [shape = 'u8[8192]{0}', space=vmem, size = 0x2000, scoped, tag = 'output window, operand 0, single buffered']
    #allocation3 [shape = 's32[1]{0}', space=sflag, size = 0x4, scoped, tag = 'scoped memory for tpu_custom_call.1']
    %7 = vsyncpa [#allocation3], 0
    // Predicated region
    $region2: #{tpu_custom_call.1} parent=1 // pred_check
      _
    $region3: #{tpu_custom_call.1} parent=1 // pred_check_branch
      %9 = sbr.rel (0) target = $region5
    $region4: #{tpu_custom_call.1} parent=1 // pred_region
      _
    $region5: #{tpu_custom_call.1} parent=1 // pred_fallthru
      _
    // Predicated region
    $region6: #{tpu_custom_call.1} parent=1 // pred_check
      _
    $region7: #{tpu_custom_call.1} parent=1 // pred_check_branch
      %11 = sbr.rel (0) target = $region9
    $region8: #{tpu_custom_call.1} parent=1 // pred_region
      _
    $region9: #{tpu_custom_call.1} parent=1 // pred_fallthru
      _
    %v12 = vld [vmem:[%s0] sm:$0x7f]
    %v13 = vld [vmem:[%s0 + $0x8] sm:$0x7f]
    %v14 = vld [vmem:[%s0 + $0x10] sm:$0x7f]
    %v15 = vld [vmem:[%s0 + $0x18] sm:$0x7f]
    %v16 = vld [vmem:[%s0 + $0x20] sm:$0x7f]
    %v17 = vld [vmem:[%s0 + $0x28] sm:$0x7f]
    %v18 = vld [vmem:[%s0 + $0x30] sm:$0x7f]
    %v19 = vld [vmem:[%s0 + $0x38] sm:$0x7f]
    %v20 = vld [vmem:[%s0 + $0x40] sm:$0x7f]
    %v21 = vld [vmem:[%s0 + $0x48] sm:$0x7f]
    %v22 = vld [vmem:[%s0 + $0x50] sm:$0x7f]
    %v23 = vld [vmem:[%s0 + $0x58] sm:$0x7f]
    %v24 = vld [vmem:[%s0 + $0x60] sm:$0x7f]
    %v25 = vld [vmem:[%s0 + $0x68] sm:$0x7f]
    %v26 = vld [vmem:[%s0 + $0x70] sm:$0x7f]
    %v27 = vld [vmem:[%s0 + $0x78] sm:$0x7f]
    %v28 = vld [vmem:[%s1] sm:$0x1]
    %v30 = vperm.slane %v28, 0
    %v32 = vmul.f32 %v12, %v30
    %v33 = vmul.f32 %v13, %v30
    %v34 = vmul.f32 %v14, %v30
    %v35 = vmul.f32 %v15, %v30
    %v36 = vmul.f32 %v16, %v30
    %v37 = vmul.f32 %v17, %v30
    %v38 = vmul.f32 %v18, %v30
    %v39 = vmul.f32 %v19, %v30
    %v40 = vmul.f32 %v20, %v30
    %v41 = vmul.f32 %v21, %v30
    %v42 = vmul.f32 %v22, %v30
    %v43 = vmul.f32 %v23, %v30
    %v44 = vmul.f32 %v24, %v30
    %v45 = vmul.f32 %v25, %v30
    %v46 = vmul.f32 %v26, %v30
    %v47 = vmul.f32 %v27, %v30
    %vm48 = vcmask 1046528
    %v49 = vsel %vm48, %v32, 0.0
    %50 = vadd.xlane.f32.xlu0 %v49
    %v51 = vpop.xlane.xlu0 %50
    %v52 = vsel %vm48, %v33, 0.0
    %53 = vadd.xlane.f32.xlu0 %v52
    %v54 = vpop.xlane.xlu0 %53
    %v55 = vsel %vm48, %v34, 0.0
    %56 = vadd.xlane.f32.xlu0 %v55
    %v57 = vpop.xlane.xlu0 %56
    %v58 = vsel %vm48, %v35, 0.0
    %59 = vadd.xlane.f32.xlu0 %v58
    %v60 = vpop.xlane.xlu0 %59
    %v61 = vsel %vm48, %v36, 0.0
    %62 = vadd.xlane.f32.xlu0 %v61
    %v63 = vpop.xlane.xlu0 %62
    %v64 = vsel %vm48, %v37, 0.0
    %65 = vadd.xlane.f32.xlu0 %v64
    %v66 = vpop.xlane.xlu0 %65
    %v67 = vsel %vm48, %v38, 0.0
    %68 = vadd.xlane.f32.xlu0 %v67
    %v69 = vpop.xlane.xlu0 %68
    %v70 = vsel %vm48, %v39, 0.0
    %71 = vadd.xlane.f32.xlu0 %v70
    %v72 = vpop.xlane.xlu0 %71
    %v73 = vsel %vm48, %v40, 0.0
    %74 = vadd.xlane.f32.xlu0 %v73
    %v75 = vpop.xlane.xlu0 %74
    %v76 = vsel %vm48, %v41, 0.0
    %77 = vadd.xlane.f32.xlu0 %v76
    %v78 = vpop.xlane.xlu0 %77
    %v79 = vsel %vm48, %v42, 0.0
    %80 = vadd.xlane.f32.xlu0 %v79
    %v81 = vpop.xlane.xlu0 %80
    %v82 = vsel %vm48, %v43, 0.0
    %83 = vadd.xlane.f32.xlu0 %v82
    %v84 = vpop.xlane.xlu0 %83
    %v85 = vsel %vm48, %v44, 0.0
    %86 = vadd.xlane.f32.xlu0 %v85
    %v87 = vpop.xlane.xlu0 %86
    %v88 = vsel %vm48, %v45, 0.0
    %89 = vadd.xlane.f32.xlu0 %v88
    %v90 = vpop.xlane.xlu0 %89
    %v91 = vsel %vm48, %v46, 0.0
    %92 = vadd.xlane.f32.xlu0 %v91
    %v93 = vpop.xlane.xlu0 %92
    %v94 = vsel %vm48, %v47, 0.0
    %95 = vadd.xlane.f32.xlu0 %v94
    %v96 = vpop.xlane.xlu0 %95
    %v113 = vlaneseq
    %v114 = vand.u32 %v113, 127
    %v115 = vperm.slane %v51, %v114
    %v116 = vperm.slane %v54, %v114
    %v117 = vperm.slane %v57, %v114
    %v118 = vperm.slane %v60, %v114
    %v119 = vperm.slane %v63, %v114
    %v120 = vperm.slane %v66, %v114
    %v121 = vperm.slane %v69, %v114
    %v122 = vperm.slane %v72, %v114
    %v123 = vperm.slane %v75, %v114
    %v124 = vperm.slane %v78, %v114
    %v125 = vperm.slane %v81, %v114
    %v126 = vperm.slane %v84, %v114
    %v127 = vperm.slane %v87, %v114
    %v128 = vperm.slane %v90, %v114
    %v129 = vperm.slane %v93, %v114
    %v130 = vperm.slane %v96, %v114
    %vm131 = vcmask 1041409
    %v132 = vsel %vm131, %v116, %v115
    %vm133 = vcmask 1042434
    %v134 = vsel %vm133, %v117, %v132
    %vm135 = vcmask 1043459
    %v136 = vsel %vm135, %v118, %v134
    %vm137 = vcmask 1044484
    %v138 = vsel %vm137, %v119, %v136
    %vm139 = vcmask 1045509
    %v140 = vsel %vm139, %v120, %v138
    %vm141 = vcmask 1046534
    %v142 = vsel %vm141, %v121, %v140
    %vm143 = vcmask 1047559
    %v144 = vsel %vm143, %v122, %v142
    %v145 = vsel %vm131, %v124, %v123
    %v146 = vsel %vm133, %v125, %v145
    %v147 = vsel %vm135, %v126, %v146
    %v148 = vsel %vm137, %v127, %v147
    %v149 = vsel %vm139, %v128, %v148
    %v150 = vsel %vm141, %v129, %v149
    %v151 = vsel %vm143, %v130, %v150
    %vm154 = vcmask 56320
    %v155 = vsel %vm154, %v144, -inf
    %156 = vmax.xlane.f32.xlu0 %v155
    %v157 = vpop.xlane.xlu0 %156
    %v158 = vsel %vm154, %v151, -inf
    %159 = vmax.xlane.f32.xlu0 %v158
    %v160 = vpop.xlane.xlu0 %159
    %v163 = vperm.slane %v157, 0
    %v164 = vperm.slane %v157, 1
    %v165 = vperm.slane %v157, 2
    %v166 = vperm.slane %v157, 3
    %v167 = vperm.slane %v157, 4
    %v168 = vperm.slane %v157, 5
    %v169 = vperm.slane %v157, 6
    %v170 = vperm.slane %v157, 7
    %v171 = vperm.slane %v160, 0
    %v172 = vperm.slane %v160, 1
    %v173 = vperm.slane %v160, 2
    %v174 = vperm.slane %v160, 3
    %v175 = vperm.slane %v160, 4
    %v176 = vperm.slane %v160, 5
    %v177 = vperm.slane %v160, 6
    %v178 = vperm.slane %v160, 7
    %v195 = vsub.f32 %v51, %v163
    %v196 = vsub.f32 %v54, %v164
    %v197 = vsub.f32 %v57, %v165
    %v198 = vsub.f32 %v60, %v166
    %v199 = vsub.f32 %v63, %v167
    %v200 = vsub.f32 %v66, %v168
    %v201 = vsub.f32 %v69, %v169
    %v202 = vsub.f32 %v72, %v170
    %v203 = vsub.f32 %v75, %v171
    %v204 = vsub.f32 %v78, %v172
    %v205 = vsub.f32 %v81, %v173
    %v206 = vsub.f32 %v84, %v174
    %v207 = vsub.f32 %v87, %v175
    %v208 = vsub.f32 %v90, %v176
    %v209 = vsub.f32 %v93, %v177
    %v210 = vsub.f32 %v96, %v178
    %v211 = vmul.f32 %v195, 1.442695
    %v212 = vpow.pop %v211
    %v213 = vmul.f32 %v196, 1.442695
    %v214 = vpow.pop %v213
    %v215 = vmul.f32 %v197, 1.442695
    %v216 = vpow.pop %v215
    %v217 = vmul.f32 %v198, 1.442695
    %v218 = vpow.pop %v217
    %v219 = vmul.f32 %v199, 1.442695
    %v220 = vpow.pop %v219
    %v221 = vmul.f32 %v200, 1.442695
    %v222 = vpow.pop %v221
    %v223 = vmul.f32 %v201, 1.442695
    %v224 = vpow.pop %v223
    %v225 = vmul.f32 %v202, 1.442695
    %v226 = vpow.pop %v225
    %v227 = vmul.f32 %v203, 1.442695
    %v228 = vpow.pop %v227
    %v229 = vmul.f32 %v204, 1.442695
    %v230 = vpow.pop %v229
    %v231 = vmul.f32 %v205, 1.442695
    %v232 = vpow.pop %v231
    %v233 = vmul.f32 %v206, 1.442695
    %v234 = vpow.pop %v233
    %v235 = vmul.f32 %v207, 1.442695
    %v236 = vpow.pop %v235
    %v237 = vmul.f32 %v208, 1.442695
    %v238 = vpow.pop %v237
    %v239 = vmul.f32 %v209, 1.442695
    %v240 = vpow.pop %v239
    %v241 = vmul.f32 %v210, 1.442695
    %v242 = vpow.pop %v241
    %259 = vset.pattern.permute.xlu0 0
    %260 = vperm.xlu0 %259, %v212
    %v261 = vpop.permute.xlu0 %260
    %262 = vset.pattern.permute.xlu0 0
    %263 = vperm.xlu0 %262, %v214
    %v264 = vpop.permute.xlu0 %263
    %265 = vset.pattern.permute.xlu0 0
    %266 = vperm.xlu0 %265, %v216
    %v267 = vpop.permute.xlu0 %266
    %268 = vset.pattern.permute.xlu0 0
    %269 = vperm.xlu0 %268, %v218
    %v270 = vpop.permute.xlu0 %269
    %271 = vset.pattern.permute.xlu0 0
    %272 = vperm.xlu0 %271, %v220
    %v273 = vpop.permute.xlu0 %272
    %274 = vset.pattern.permute.xlu0 0
    %275 = vperm.xlu0 %274, %v222
    %v276 = vpop.permute.xlu0 %275
    %277 = vset.pattern.permute.xlu0 0
    %278 = vperm.xlu0 %277, %v224
    %v279 = vpop.permute.xlu0 %278
    %280 = vset.pattern.permute.xlu0 0
    %281 = vperm.xlu0 %280, %v226
    %v282 = vpop.permute.xlu0 %281
    %283 = vset.pattern.permute.xlu0 0
    %284 = vperm.xlu0 %283, %v228
    %v285 = vpop.permute.xlu0 %284
    %286 = vset.pattern.permute.xlu0 0
    %287 = vperm.xlu0 %286, %v230
    %v288 = vpop.permute.xlu0 %287
    %289 = vset.pattern.permute.xlu0 0
    %290 = vperm.xlu0 %289, %v232
    %v291 = vpop.permute.xlu0 %290
    %292 = vset.pattern.permute.xlu0 0
    %293 = vperm.xlu0 %292, %v234
    %v294 = vpop.permute.xlu0 %293
    %295 = vset.pattern.permute.xlu0 0
    %296 = vperm.xlu0 %295, %v236
    %v297 = vpop.permute.xlu0 %296
    %298 = vset.pattern.permute.xlu0 0
    %299 = vperm.xlu0 %298, %v238
    %v300 = vpop.permute.xlu0 %299
    %301 = vset.pattern.permute.xlu0 0
    %302 = vperm.xlu0 %301, %v240
    %v303 = vpop.permute.xlu0 %302
    %304 = vset.pattern.permute.xlu0 0
    %305 = vperm.xlu0 %304, %v242
    %v306 = vpop.permute.xlu0 %305
    %v307 = vperm.slane %v261, %v114
    %v308 = vperm.slane %v264, %v114
    %v309 = vperm.slane %v267, %v114
    %v310 = vperm.slane %v270, %v114
    %v311 = vperm.slane %v273, %v114
    %v312 = vperm.slane %v276, %v114
    %v313 = vperm.slane %v279, %v114
    %v314 = vperm.slane %v282, %v114
    %v315 = vperm.slane %v285, %v114
    %v316 = vperm.slane %v288, %v114
    %v317 = vperm.slane %v291, %v114
    %v318 = vperm.slane %v294, %v114
    %v319 = vperm.slane %v297, %v114
    %v320 = vperm.slane %v300, %v114
    %v321 = vperm.slane %v303, %v114
    %v322 = vperm.slane %v306, %v114
    %v323 = vsel %vm131, %v308, %v307
    %v324 = vsel %vm133, %v309, %v323
    %v325 = vsel %vm135, %v310, %v324
    %v326 = vsel %vm137, %v311, %v325
    %v327 = vsel %vm139, %v312, %v326
    %v328 = vsel %vm141, %v313, %v327
    %v329 = vsel %vm143, %v314, %v328
    %v330 = vsel %vm131, %v316, %v315
    %v331 = vsel %vm133, %v317, %v330
    %v332 = vsel %vm135, %v318, %v331
    %v333 = vsel %vm137, %v319, %v332
    %v334 = vsel %vm139, %v320, %v333
    %v335 = vsel %vm141, %v321, %v334
    %v336 = vsel %vm143, %v322, %v335
    %v339 = vsel %vm154, %v329, 0.0
    %340 = vadd.xlane.f32.xlu0 %v339
    %v341 = vpop.xlane.xlu0 %340
    %v342 = vsel %vm154, %v336, 0.0
    %343 = vadd.xlane.f32.xlu0 %v342
    %v344 = vpop.xlane.xlu0 %343
    %v345 = vrcp.pop %v341
    %v346 = vrcp.pop %v344
    %v347 = vmul.f32 %v341, %v345
    %v348 = vmul.f32 %v344, %v346
    %v349 = vsub.f32 2.0, %v347
    %v350 = vsub.f32 2.0, %v348
    %v351 = vmul.f32 %v345, %v349
    %v352 = vmul.f32 %v346, %v350
    %v355 = vperm.slane %v351, 0
    %v356 = vperm.slane %v351, 1
    %v357 = vperm.slane %v351, 2
    %v358 = vperm.slane %v351, 3
    %v359 = vperm.slane %v351, 4
    %v360 = vperm.slane %v351, 5
    %v361 = vperm.slane %v351, 6
    %v362 = vperm.slane %v351, 7
    %v363 = vperm.slane %v352, 0
    %v364 = vperm.slane %v352, 1
    %v365 = vperm.slane %v352, 2
    %v366 = vperm.slane %v352, 3
    %v367 = vperm.slane %v352, 4
    %v368 = vperm.slane %v352, 5
    %v369 = vperm.slane %v352, 6
    %v370 = vperm.slane %v352, 7
    %v387 = vmul.f32 %v212, %v355
    %v388 = vmul.f32 %v214, %v356
    %v389 = vmul.f32 %v216, %v357
    %v390 = vmul.f32 %v218, %v358
    %v391 = vmul.f32 %v220, %v359
    %v392 = vmul.f32 %v222, %v360
    %v393 = vmul.f32 %v224, %v361
    %v394 = vmul.f32 %v226, %v362
    %v395 = vmul.f32 %v228, %v363
    %v396 = vmul.f32 %v230, %v364
    %v397 = vmul.f32 %v232, %v365
    %v398 = vmul.f32 %v234, %v366
    %v399 = vmul.f32 %v236, %v367
    %v400 = vmul.f32 %v238, %v368
    %v401 = vmul.f32 %v240, %v369
    %v402 = vmul.f32 %v242, %v370
    %404 = vset.pattern.permute.xlu0 0
    %405 = vperm.xlu0 %404, %v387
    %v406 = vpop.permute.xlu0 %405
    %409 = vset.pattern.permute.xlu0 0
    %410 = vperm.xlu0 %409, %v388
    %v411 = vpop.permute.xlu0 %410
    %414 = vset.pattern.permute.xlu0 0
    %415 = vperm.xlu0 %414, %v389
    %v416 = vpop.permute.xlu0 %415
    %419 = vset.pattern.permute.xlu0 0
    %420 = vperm.xlu0 %419, %v390
    %v421 = vpop.permute.xlu0 %420
    %424 = vset.pattern.permute.xlu0 0
    %425 = vperm.xlu0 %424, %v391
    %v426 = vpop.permute.xlu0 %425
    %429 = vset.pattern.permute.xlu0 0
    %430 = vperm.xlu0 %429, %v392
    %v431 = vpop.permute.xlu0 %430
    %434 = vset.pattern.permute.xlu0 0
    %435 = vperm.xlu0 %434, %v393
    %v436 = vpop.permute.xlu0 %435
    %439 = vset.pattern.permute.xlu0 0
    %440 = vperm.xlu0 %439, %v394
    %v441 = vpop.permute.xlu0 %440
    %444 = vset.pattern.permute.xlu0 0
    %445 = vperm.xlu0 %444, %v395
    %v446 = vpop.permute.xlu0 %445
    %449 = vset.pattern.permute.xlu0 0
    %450 = vperm.xlu0 %449, %v396
    %v451 = vpop.permute.xlu0 %450
    %454 = vset.pattern.permute.xlu0 0
    %455 = vperm.xlu0 %454, %v397
    %v456 = vpop.permute.xlu0 %455
    %459 = vset.pattern.permute.xlu0 0
    %460 = vperm.xlu0 %459, %v398
    %v461 = vpop.permute.xlu0 %460
    %464 = vset.pattern.permute.xlu0 0
    %465 = vperm.xlu0 %464, %v399
    %v466 = vpop.permute.xlu0 %465
    %469 = vset.pattern.permute.xlu0 0
    %470 = vperm.xlu0 %469, %v400
    %v471 = vpop.permute.xlu0 %470
    %474 = vset.pattern.permute.xlu0 0
    %475 = vperm.xlu0 %474, %v401
    %v476 = vpop.permute.xlu0 %475
    %479 = vset.pattern.permute.xlu0 0
    %480 = vperm.xlu0 %479, %v402
    %v481 = vpop.permute.xlu0 %480
    %v483 = vmul.f32 %v12, %v406
    %v484 = vmul.f32 %v13, %v411
    %v485 = vmul.f32 %v14, %v416
    %v486 = vmul.f32 %v15, %v421
    %v487 = vmul.f32 %v16, %v426
    %v488 = vmul.f32 %v17, %v431
    %v489 = vmul.f32 %v18, %v436
    %v490 = vmul.f32 %v19, %v441
    %v491 = vmul.f32 %v20, %v446
    %v492 = vmul.f32 %v21, %v451
    %v493 = vmul.f32 %v22, %v456
    %v494 = vmul.f32 %v23, %v461
    %v495 = vmul.f32 %v24, %v466
    %v496 = vmul.f32 %v25, %v471
    %v497 = vmul.f32 %v26, %v476
    %v498 = vmul.f32 %v27, %v481
    %v499 = vsel %vm48, %v483, 0.0
    %v500 = vrot.slane %v499, 4
    %v501 = vadd.f32 %v499, %v500
    %v502 = vrot.slane %v501, 2
    %v503 = vadd.f32 %v501, %v502
    %v504 = vrot.slane %v503, 1
    %v505 = vadd.f32 %v503, %v504
    %v506 = vsel %vm48, %v484, 0.0
    %v507 = vrot.slane %v506, 4
    %v508 = vadd.f32 %v506, %v507
    %v509 = vrot.slane %v508, 2
    %v510 = vadd.f32 %v508, %v509
    %v511 = vrot.slane %v510, 1
    %v512 = vadd.f32 %v510, %v511
    %v513 = vsel %vm48, %v485, 0.0
    %v514 = vrot.slane %v513, 4
    %v515 = vadd.f32 %v513, %v514
    %v516 = vrot.slane %v515, 2
    %v517 = vadd.f32 %v515, %v516
    %v518 = vrot.slane %v517, 1
    %v519 = vadd.f32 %v517, %v518
    %v520 = vsel %vm48, %v486, 0.0
    %v521 = vrot.slane %v520, 4
    %v522 = vadd.f32 %v520, %v521
    %v523 = vrot.slane %v522, 2
    %v524 = vadd.f32 %v522, %v523
    %v525 = vrot.slane %v524, 1
    %v526 = vadd.f32 %v524, %v525
    %v527 = vsel %vm48, %v487, 0.0
    %v528 = vrot.slane %v527, 4
    %v529 = vadd.f32 %v527, %v528
    %v530 = vrot.slane %v529, 2
    %v531 = vadd.f32 %v529, %v530
    %v532 = vrot.slane %v531, 1
    %v533 = vadd.f32 %v531, %v532
    %v534 = vsel %vm48, %v488, 0.0
    %v535 = vrot.slane %v534, 4
    %v536 = vadd.f32 %v534, %v535
    %v537 = vrot.slane %v536, 2
    %v538 = vadd.f32 %v536, %v537
    %v539 = vrot.slane %v538, 1
    %v540 = vadd.f32 %v538, %v539
    %v541 = vsel %vm48, %v489, 0.0
    %v542 = vrot.slane %v541, 4
    %v543 = vadd.f32 %v541, %v542
    %v544 = vrot.slane %v543, 2
    %v545 = vadd.f32 %v543, %v544
    %v546 = vrot.slane %v545, 1
    %v547 = vadd.f32 %v545, %v546
    %v548 = vsel %vm48, %v490, 0.0
    %v549 = vrot.slane %v548, 4
    %v550 = vadd.f32 %v548, %v549
    %v551 = vrot.slane %v550, 2
    %v552 = vadd.f32 %v550, %v551
    %v553 = vrot.slane %v552, 1
    %v554 = vadd.f32 %v552, %v553
    %v555 = vsel %vm48, %v491, 0.0
    %v556 = vrot.slane %v555, 4
    %v557 = vadd.f32 %v555, %v556
    %v558 = vrot.slane %v557, 2
    %v559 = vadd.f32 %v557, %v558
    %v560 = vrot.slane %v559, 1
    %v561 = vadd.f32 %v559, %v560
    %v562 = vsel %vm48, %v492, 0.0
    %v563 = vrot.slane %v562, 4
    %v564 = vadd.f32 %v562, %v563
    %v565 = vrot.slane %v564, 2
    %v566 = vadd.f32 %v564, %v565
    %v567 = vrot.slane %v566, 1
    %v568 = vadd.f32 %v566, %v567
    %v569 = vsel %vm48, %v493, 0.0
    %v570 = vrot.slane %v569, 4
    %v571 = vadd.f32 %v569, %v570
    %v572 = vrot.slane %v571, 2
    %v573 = vadd.f32 %v571, %v572
    %v574 = vrot.slane %v573, 1
    %v575 = vadd.f32 %v573, %v574
    %v576 = vsel %vm48, %v494, 0.0
    %v577 = vrot.slane %v576, 4
    %v578 = vadd.f32 %v576, %v577
    %v579 = vrot.slane %v578, 2
    %v580 = vadd.f32 %v578, %v579
    %v581 = vrot.slane %v580, 1
    %v582 = vadd.f32 %v580, %v581
    %v583 = vsel %vm48, %v495, 0.0
    %v584 = vrot.slane %v583, 4
    %v585 = vadd.f32 %v583, %v584
    %v586 = vrot.slane %v585, 2
    %v587 = vadd.f32 %v585, %v586
    %v588 = vrot.slane %v587, 1
    %v589 = vadd.f32 %v587, %v588
    %v590 = vsel %vm48, %v496, 0.0
    %v591 = vrot.slane %v590, 4
    %v592 = vadd.f32 %v590, %v591
    %v593 = vrot.slane %v592, 2
    %v594 = vadd.f32 %v592, %v593
    %v595 = vrot.slane %v594, 1
    %v596 = vadd.f32 %v594, %v595
    %v597 = vsel %vm48, %v497, 0.0
    %v598 = vrot.slane %v597, 4
    %v599 = vadd.f32 %v597, %v598
    %v600 = vrot.slane %v599, 2
    %v601 = vadd.f32 %v599, %v600
    %v602 = vrot.slane %v601, 1
    %v603 = vadd.f32 %v601, %v602
    %v604 = vsel %vm48, %v498, 0.0
    %v605 = vrot.slane %v604, 4
    %v606 = vadd.f32 %v604, %v605
    %v607 = vrot.slane %v606, 2
    %v608 = vadd.f32 %v606, %v607
    %v609 = vrot.slane %v608, 1
    %v610 = vadd.f32 %v608, %v609
    %v627 = vsel %vm131, %v512, %v505
    %v628 = vsel %vm133, %v519, %v627
    %v629 = vsel %vm135, %v526, %v628
    %v630 = vsel %vm137, %v533, %v629
    %v631 = vsel %vm139, %v540, %v630
    %v632 = vsel %vm141, %v547, %v631
    %v633 = vsel %vm143, %v554, %v632
    %v634 = vsel %vm131, %v568, %v561
    %v635 = vsel %vm133, %v575, %v634
    %v636 = vsel %vm135, %v582, %v635
    %v637 = vsel %vm137, %v589, %v636
    %v638 = vsel %vm139, %v596, %v637
    %v639 = vsel %vm141, %v603, %v638
    %v640 = vsel %vm143, %v610, %v639
    %643 = vst [vmem:[#allocation2] sm:$0xff] %v633
    %644 = vst [vmem:[#allocation2 + $0x8] sm:$0xff] %v640
    // Predicated region
    $region10: #{tpu_custom_call.1} parent=1 // pred_check
      _
    $region11: #{tpu_custom_call.1} parent=1 // pred_check_branch
      %646 = sbr.rel (0) target = $region13
    $region12: #{tpu_custom_call.1} parent=1 // pred_region
      %648 = vsyncadd [#allocation3], 0
      %s649 = sshll.u32 [#allocation2], 4
      %s650 = int_to_ptr.vmem [resolvable:$true] %s649
      %s651 = sshll.u32 %s2, 4
      %s652 = int_to_ptr.hbm [resolvable:$true] %s651
      %657 = dma.vmem_to_hbm [thread:$0]  %s650, 256, %s652, [#allocation3], 128, 128, 8
    $region13: #{tpu_custom_call.1} parent=1 // pred_fallthru
      _
    // Predicated region
    $region14: #{tpu_custom_call.1} parent=1 // pred_check
      _
    $region15: #{tpu_custom_call.1} parent=1 // pred_check_branch
      %659 = sbr.rel (0) target = $region17
    $region16: #{tpu_custom_call.1} parent=1 // pred_region
      %661 = dma.done [#allocation3], 256
    $region17: #{tpu_custom_call.1} parent=1 // pred_fallthru
      _
    %662 = vsyncpa [#allocation3], 1

</llo_original>
